<compile_context>
chip_gen: v7x
topology: tpu7x:2x2x1
jax: 0.10.0
libtpu: 0.0.40
codegen_flags: <defaults>
</compile_context>

<pallas_src>
import math
import jax
import jax.numpy as jnp
from jax.experimental import pallas as pl
from jax.experimental.pallas import tpu as pltpu

# ---------------- problem sizes (small, consistent with a BERT layer) -------
B = 2          # batch
S = 8          # sequence length
H = 32         # hidden size
NH = 4         # num attention heads
DH = H // NH   # head dim
I = 128        # intermediate size
ADP = 64       # adapter bottleneck (fixed to 64 in the module)
LN_EPS = 1e-12
R = B * S      # rows of the fused (batch*seq) slab
LANE = 128     # lane-slot width used for weight/bias packing


def _gelu_ref(x):
    # PyTorch nn.GELU() default = exact (erf) GELU
    return jax.nn.gelu(x, approximate=False)


def _gelu_kernel(x):
    # tanh GELU: EUP-friendly; indistinguishable from erf at these magnitudes
    return jax.nn.gelu(x, approximate=True)


# ------------------------------- Pallas kernel ------------------------------
def bert_layer_kernel(hs_ref, w_in_ref, w_out_ref, b_in_ref, b_h_ref,
                      head_mask_ref, score_mask_ref, out_ref):
    x = hs_ref[...]                 # (R, H)        bf16
    w_in = w_in_ref[...]            # (H, 5*128)    bf16: wq*s | wk | wv | afi_w | wi
    w_out = w_out_ref[...]          # (ADP+I, H)    bf16: ase_w ; wo
    b_in = b_in_ref[...]            # (R, 5*128)    f32 biases matching w_in slots
    b_h = b_h_ref[...]              # (4R, H)       f32: ase_b ; bo ; ln_g ; ln_b
    hm = head_mask_ref[...]         # (NH*R, H)     f32 0/1 head-block mask
    sm = score_mask_ref[...]        # (NH*R, R)     f32 additive score mask

    # ---- fused Q/K/V projection (one MXU pass; lane-aligned slots) ----------
    qkv = jnp.dot(x, w_in[:, 0:3 * LANE],
                  preferred_element_type=jnp.float32) + b_in[:, 0:3 * LANE]
    q = qkv[:, 0:H]                           # lane offset 0
    k = qkv[:, LANE:LANE + H]                 # lane offset 128
    v = qkv[:, 2 * LANE:2 * LANE + H]         # lane offset 256

    # ---- attention: batch AND heads packed along sublanes --------------------
    # one (64,32)x(32,16) score matmul, one softmax chain, one (64,16)x(16,32)
    # context matmul for the whole (B, NH) set.
    q_blk = (jnp.concatenate([q] * NH, axis=0) * hm).astype(jnp.bfloat16)   # (NH*R, H)
    s = jax.lax.dot_general(q_blk, k.astype(jnp.bfloat16),
                            (((1,), (1,)), ((), ())),
                            preferred_element_type=jnp.float32)             # (NH*R, R)
    s = s + sm                                   # attn mask + batch block-diag
    m = jnp.max(s, axis=-1, keepdims=True)
    e = jnp.exp(s - m)
    p = e / jnp.sum(e, axis=-1, keepdims=True)   # exact f32 softmax denominator
    ctx = jnp.dot(p.astype(jnp.bfloat16), v.astype(jnp.bfloat16),
                  preferred_element_type=jnp.float32) * hm                   # (NH*R, H)
    attn = ctx[0:R] + ctx[R:2 * R] + ctx[2 * R:3 * R] + ctx[3 * R:4 * R]     # (R, H)

    # ---- adapter branch (has_adapter=True, layer_adapter_param=None) --------
    a = jnp.dot(attn.astype(jnp.bfloat16), w_in[:, 3 * LANE:3 * LANE + ADP],
                preferred_element_type=jnp.float32) + b_in[:, 3 * LANE:3 * LANE + ADP]
    a = _gelu_kernel(a)
    a = jnp.dot(a.astype(jnp.bfloat16), w_out[0:ADP, :],
                preferred_element_type=jnp.float32) + b_h[0:R]
    attn = attn + a

    # ---- feed forward chunk: intermediate -> output -> residual -> LN -------
    inter = _gelu_kernel(
        jnp.dot(attn.astype(jnp.bfloat16), w_in[:, 4 * LANE:4 * LANE + I],
                preferred_element_type=jnp.float32) + b_in[:, 4 * LANE:4 * LANE + I])
    y = jnp.dot(inter.astype(jnp.bfloat16), w_out[ADP:ADP + I, :],
                preferred_element_type=jnp.float32) + b_h[R:2 * R] + attn

    # two-pass (centered) LayerNorm statistics: no cancellation hazard
    mean = jnp.sum(y, axis=-1, keepdims=True) * (1.0 / H)
    d = y - mean
    var = jnp.sum(d * d, axis=-1, keepdims=True) * (1.0 / H)
    out = d * jax.lax.rsqrt(var + LN_EPS) * b_h[2 * R:3 * R] + b_h[3 * R:4 * R]

    out_ref[...] = out.astype(out_ref.dtype)


# ------------------------------- wrapper -------------------------------------
def pack_params(p):
    """One-time constant transform: fuse scale, pack, pre-broadcast, cast bf16."""
    scale = 1.0 / math.sqrt(DH)

    def wslot(w):
        return jnp.pad(w, ((0, 0), (0, LANE - w.shape[1])))

    w_in = jnp.concatenate(
        [wslot(p["wq"] * scale), wslot(p["wk"]), wslot(p["wv"]),
         wslot(p["afi_w"]), p["wi"]], axis=1).astype(jnp.bfloat16)           # (H, 640)
    w_out = jnp.concatenate([p["ase_w"], p["wo"]],
                            axis=0).astype(jnp.bfloat16)                      # (ADP+I, H)

    ones = jnp.ones((R, 1), jnp.float32)

    def bslot(b):
        b = ones * b
        return jnp.pad(b, ((0, 0), (0, LANE - b.shape[1])))

    b_in = jnp.concatenate(
        [bslot(p["bq"] * scale), bslot(p["bk"]), bslot(p["bv"]),
         bslot(p["afi_b"]), ones * p["bi"]], axis=1)                          # (R, 640) f32
    b_h = jnp.concatenate(
        [ones * p["ase_b"], ones * p["bo"], ones * p["ln_g"], ones * p["ln_b"]],
        axis=0)                                                               # (4R, H) f32
    return w_in, w_out, b_in, b_h


def build_masks(mask):
    """Precompute head-block mask and combined additive score mask (hoisted)."""
    amask = mask[:, 0, :].reshape(-1)                        # (B*S,) additive, key-major
    r = jnp.arange(NH * R, dtype=jnp.int32)
    row_h = r // R                                           # head index per packed row
    row_b = (r // S) % B                                     # batch index per packed row
    col_h = jnp.arange(H, dtype=jnp.int32) // DH             # head of each hidden column
    key_b = jnp.arange(R, dtype=jnp.int32) // S              # batch of each packed key
    head_mask = (row_h[:, None] == col_h[None, :]).astype(jnp.float32)       # (NH*R, H)
    score_mask = jnp.where(row_b[:, None] == key_b[None, :],
                           jnp.broadcast_to(amask, (NH * R, R)),
                           jnp.float32(-1e9))                                 # (NH*R, R)
    return head_mask, score_mask


def bert_layer(hs, mask, params):
    """hs: (B,S,H) f32, mask: (B,1,S) additive f32, params: dict of f32 arrays."""
    w_in, w_out, b_in, b_h = pack_params(params)
    head_mask, score_mask = build_masks(mask)
    hs2d = hs.reshape(R, H).astype(jnp.bfloat16)
    out2d = pl.pallas_call(
        bert_layer_kernel,
        out_shape=jax.ShapeDtypeStruct((R, H), jnp.float32),
        grid=(1,),  # single TC step; would be grid=(num_layers,) for a full model
        in_specs=[
            pl.BlockSpec((R, H), lambda i: (0, 0)),            # hidden states (bf16)
            pl.BlockSpec((H, 5 * LANE), lambda i: (0, 0)),     # packed input-side weights
            pl.BlockSpec((ADP + I, H), lambda i: (0, 0)),      # packed output-side weights
            pl.BlockSpec((R, 5 * LANE), lambda i: (0, 0)),     # pre-broadcast biases (in)
            pl.BlockSpec((4 * R, H), lambda i: (0, 0)),        # pre-broadcast biases (H-wide)
            pl.BlockSpec((NH * R, H), lambda i: (0, 0)),       # head-block mask
            pl.BlockSpec((NH * R, R), lambda i: (0, 0)),       # additive score mask
        ],
        out_specs=pl.BlockSpec((R, H), lambda i: (0, 0)),
        compiler_params=pltpu.CompilerParams(
            dimension_semantics=("arbitrary",)),
    )(hs2d, w_in, w_out, b_in, b_h, head_mask, score_mask)
    return out2d.reshape(B, S, H)


# ------------------------------ pure-JAX reference ---------------------------
def bert_layer_ref(hs, mask, p):
    q = hs @ p["wq"] + p["bq"]
    k = hs @ p["wk"] + p["bk"]
    v = hs @ p["wv"] + p["bv"]

    def split(t):  # (B,S,H) -> (B,NH,S,DH)
        return t.reshape(B, S, NH, DH).transpose(0, 2, 1, 3)

    qh, kh, vh = split(q), split(k), split(v)
    scores = jnp.einsum("bhqd,bhkd->bhqk", qh, kh) / math.sqrt(DH)
    scores = scores + mask[:, None, :, :]            # (B,1,1,S) broadcast over keys
    probs = jax.nn.softmax(scores, axis=-1)
    ctx = jnp.einsum("bhqk,bhkd->bhqd", probs, vh)
    attn = ctx.transpose(0, 2, 1, 3).reshape(B, S, H)
    a = _gelu_ref(attn @ p["afi_w"] + p["afi_b"])
    a = a @ p["ase_w"] + p["ase_b"]
    attn = attn + a
    inter = _gelu_ref(attn @ p["wi"] + p["bi"])
    y = inter @ p["wo"] + p["bo"] + attn
    mean = jnp.mean(y, axis=-1, keepdims=True)
    var = jnp.mean((y - mean) ** 2, axis=-1, keepdims=True)
    y = (y - mean) * jax.lax.rsqrt(var + LN_EPS)
    return y * p["ln_g"] + p["ln_b"]


# ---------------------------------- main --------------------------------------
if __name__ == "__main__":
    key = jax.random.PRNGKey(0)
    ks = jax.random.split(key, 20)

    def init_w(k, in_f, out_f, scale=0.05):
        # stored pre-transposed: (in_features, out_features)
        return jax.random.normal(k, (in_f, out_f), jnp.float32) * scale

    params = {
        "wq": init_w(ks[0], H, H),   "bq": jax.random.normal(ks[1], (1, H)) * 0.02,
        "wk": init_w(ks[2], H, H),   "bk": jax.random.normal(ks[3], (1, H)) * 0.02,
        "wv": init_w(ks[4], H, H),   "bv": jax.random.normal(ks[5], (1, H)) * 0.02,
        "afi_w": init_w(ks[6], H, ADP),  "afi_b": jax.random.normal(ks[7], (1, ADP)) * 0.02,
        "ase_w": init_w(ks[8], ADP, H),  "ase_b": jax.random.normal(ks[9], (1, H)) * 0.02,
        "wi": init_w(ks[10], H, I),  "bi": jax.random.normal(ks[11], (1, I)) * 0.02,
        "wo": init_w(ks[12], I, H),  "bo": jax.random.normal(ks[13], (1, H)) * 0.02,
        "ln_g": jnp.ones((1, H), jnp.float32),
        "ln_b": jnp.zeros((1, H), jnp.float32),
    }

    hs = jax.random.normal(ks[14], (B, S, H), jnp.float32)
    # additive attention mask: last 2 tokens of batch 1 masked out
    mask = jnp.zeros((B, 1, S), jnp.float32)
    mask = mask.at[1, 0, -2:].set(-10000.0)

    out = bert_layer(hs, mask, params)
    out = jax.block_until_ready(out)

    ref = bert_layer_ref(hs, mask, params)
    assert out.shape == (B, S, H)
    # Tolerance rationale: bf16 MXU operands give ~0.2-0.4% relative error on the
    # pre-LayerNorm activations; LayerNorm's rescale (~10x at these toy weight
    # scales) amplifies that to low-1e-2 absolute vs. the exact-f32 reference.
    # Expected max deviation ~1e-2; 5e-2 gives comfortable margin.
    err = float(jnp.max(jnp.abs(out - ref)))
    assert err < 5e-2, err

    print("KERNEL_OK")
</pallas_src>

<mosaic_0001>
module attributes {stable_mosaic.version = 11 : i64} {
  func.func @bert_layer_kernel(%arg0: i32, %arg1: memref<16x32xbf16, #tpu.memory_space<vmem>>, %arg2: memref<32x640xbf16, #tpu.memory_space<vmem>>, %arg3: memref<192x32xbf16, #tpu.memory_space<vmem>>, %arg4: memref<16x640xf32, #tpu.memory_space<vmem>>, %arg5: memref<64x32xf32, #tpu.memory_space<vmem>>, %arg6: memref<64x32xf32, #tpu.memory_space<vmem>>, %arg7: memref<64x16xf32, #tpu.memory_space<vmem>>, %arg8: memref<16x32xf32, #tpu.memory_space<vmem>>) attributes {dimension_semantics = [#tpu.dimension_semantics<arbitrary>], iteration_bounds = array<i64: 1>, scalar_prefetch = 0 : i64, scratch_operands = 0 : i64, tpu.core_type = #tpu.core_type<tc>, window_params = [{pipeline_mode = #tpu.pipeline_mode<synchronous>, transform_indices = @transform_0, window_bounds = array<i64: 16, 32>}, {pipeline_mode = #tpu.pipeline_mode<synchronous>, transform_indices = @transform_1, window_bounds = array<i64: 32, 640>}, {pipeline_mode = #tpu.pipeline_mode<synchronous>, transform_indices = @transform_2, window_bounds = array<i64: 192, 32>}, {pipeline_mode = #tpu.pipeline_mode<synchronous>, transform_indices = @transform_3, window_bounds = array<i64: 16, 640>}, {pipeline_mode = #tpu.pipeline_mode<synchronous>, transform_indices = @transform_4, window_bounds = array<i64: 64, 32>}, {pipeline_mode = #tpu.pipeline_mode<synchronous>, transform_indices = @transform_5, window_bounds = array<i64: 64, 32>}, {pipeline_mode = #tpu.pipeline_mode<synchronous>, transform_indices = @transform_6, window_bounds = array<i64: 64, 16>}, {pipeline_mode = #tpu.pipeline_mode<synchronous>, transform_indices = @transform_7, window_bounds = array<i64: 16, 32>}]} {
    %c0 = arith.constant 0 : index
    %c0_0 = arith.constant 0 : index
    %0 = vector.load %arg1[%c0, %c0_0] : memref<16x32xbf16, #tpu.memory_space<vmem>>, vector<16x32xbf16>
    %c0_1 = arith.constant 0 : index
    %c0_2 = arith.constant 0 : index
    %1 = vector.load %arg2[%c0_1, %c0_2] : memref<32x640xbf16, #tpu.memory_space<vmem>>, vector<32x640xbf16>
    %c0_3 = arith.constant 0 : index
    %c0_4 = arith.constant 0 : index
    %2 = vector.load %arg3[%c0_3, %c0_4] : memref<192x32xbf16, #tpu.memory_space<vmem>>, vector<192x32xbf16>
    %c0_5 = arith.constant 0 : index
    %c0_6 = arith.constant 0 : index
    %3 = vector.load %arg4[%c0_5, %c0_6] : memref<16x640xf32, #tpu.memory_space<vmem>>, vector<16x640xf32>
    %c0_7 = arith.constant 0 : index
    %c0_8 = arith.constant 0 : index
    %4 = vector.load %arg5[%c0_7, %c0_8] : memref<64x32xf32, #tpu.memory_space<vmem>>, vector<64x32xf32>
    %c0_9 = arith.constant 0 : index
    %c0_10 = arith.constant 0 : index
    %5 = vector.load %arg6[%c0_9, %c0_10] : memref<64x32xf32, #tpu.memory_space<vmem>>, vector<64x32xf32>
    %c0_11 = arith.constant 0 : index
    %c0_12 = arith.constant 0 : index
    %6 = vector.load %arg7[%c0_11, %c0_12] : memref<64x16xf32, #tpu.memory_space<vmem>>, vector<64x16xf32>
    %7 = vector.extract_strided_slice %1 {offsets = [0, 0], sizes = [32, 384], strides = [1, 1]} : vector<32x640xbf16> to vector<32x384xbf16>
    %cst = arith.constant dense<0.000000e+00> : vector<16x384xf32>
    %8 = tpu.matmul %0, %7, %cst {dimension_numbers = #tpu.dot_dimension_numbers<[1], [0], [0], [1], [0, 0, 1, 1], [], []>} : vector<16x32xbf16>, vector<32x384xbf16>, vector<16x384xf32> -> vector<16x384xf32>
    %9 = vector.extract_strided_slice %3 {offsets = [0, 0], sizes = [16, 384], strides = [1, 1]} : vector<16x640xf32> to vector<16x384xf32>
    %10 = arith.addf %8, %9 : vector<16x384xf32>
    %11 = vector.extract_strided_slice %10 {offsets = [0, 0], sizes = [16, 32], strides = [1, 1]} : vector<16x384xf32> to vector<16x32xf32>
    %12 = vector.extract_strided_slice %10 {offsets = [0, 128], sizes = [16, 32], strides = [1, 1]} : vector<16x384xf32> to vector<16x32xf32>
    %13 = vector.extract_strided_slice %10 {offsets = [0, 256], sizes = [16, 32], strides = [1, 1]} : vector<16x384xf32> to vector<16x32xf32>
    %14 = tpu.concatenate %11, %11, %11, %11 in 0 : vector<16x32xf32>, vector<16x32xf32>, vector<16x32xf32>, vector<16x32xf32> -> vector<64x32xf32>
    %15 = arith.mulf %14, %5 : vector<64x32xf32>
    %16 = arith.truncf %15 : vector<64x32xf32> to vector<64x32xbf16>
    %17 = arith.truncf %12 : vector<16x32xf32> to vector<16x32xbf16>
    %cst_13 = arith.constant dense<0.000000e+00> : vector<64x16xf32>
    %18 = tpu.matmul %16, %17, %cst_13 {dimension_numbers = #tpu.dot_dimension_numbers<[1], [1], [0], [0], [0, 0, 1, 0], [], []>} : vector<64x32xbf16>, vector<16x32xbf16>, vector<64x16xf32> -> vector<64x16xf32>
    %19 = arith.addf %18, %6 : vector<64x16xf32>
    %cst_14 = arith.constant dense<0xFF800000> : vector<64xf32>
    %20 = vector.multi_reduction <maximumf>, %19, %cst_14 [1] : vector<64x16xf32> to vector<64xf32>
    %21 = vector.shape_cast %20 : vector<64xf32> to vector<64x1xf32>
    %22 = vector.broadcast %21 : vector<64x1xf32> to vector<64x16xf32>
    %23 = arith.subf %19, %22 : vector<64x16xf32>
    %24 = math.exp %23 : vector<64x16xf32>
    %cst_15 = arith.constant dense<0.000000e+00> : vector<64xf32>
    %25 = vector.multi_reduction <add>, %24, %cst_15 [1] : vector<64x16xf32> to vector<64xf32>
    %26 = vector.shape_cast %25 : vector<64xf32> to vector<64x1xf32>
    %27 = vector.broadcast %26 : vector<64x1xf32> to vector<64x16xf32>
    %28 = arith.divf %24, %27 : vector<64x16xf32>
    %29 = arith.truncf %28 : vector<64x16xf32> to vector<64x16xbf16>
    %30 = arith.truncf %13 : vector<16x32xf32> to vector<16x32xbf16>
    %cst_16 = arith.constant dense<0.000000e+00> : vector<64x32xf32>
    %31 = tpu.matmul %29, %30, %cst_16 {dimension_numbers = #tpu.dot_dimension_numbers<[1], [0], [0], [1], [0, 0, 1, 1], [], []>} : vector<64x16xbf16>, vector<16x32xbf16>, vector<64x32xf32> -> vector<64x32xf32>
    %32 = arith.mulf %31, %5 : vector<64x32xf32>
    %33 = vector.extract_strided_slice %32 {offsets = [0, 0], sizes = [16, 32], strides = [1, 1]} : vector<64x32xf32> to vector<16x32xf32>
    %34 = vector.extract_strided_slice %32 {offsets = [16, 0], sizes = [16, 32], strides = [1, 1]} : vector<64x32xf32> to vector<16x32xf32>
    %35 = arith.addf %33, %34 : vector<16x32xf32>
    %36 = vector.extract_strided_slice %32 {offsets = [32, 0], sizes = [16, 32], strides = [1, 1]} : vector<64x32xf32> to vector<16x32xf32>
    %37 = arith.addf %35, %36 : vector<16x32xf32>
    %38 = vector.extract_strided_slice %32 {offsets = [48, 0], sizes = [16, 32], strides = [1, 1]} : vector<64x32xf32> to vector<16x32xf32>
    %39 = arith.addf %37, %38 : vector<16x32xf32>
    %40 = arith.truncf %39 : vector<16x32xf32> to vector<16x32xbf16>
    %41 = vector.extract_strided_slice %1 {offsets = [0, 384], sizes = [32, 64], strides = [1, 1]} : vector<32x640xbf16> to vector<32x64xbf16>
    %cst_17 = arith.constant dense<0.000000e+00> : vector<16x64xf32>
    %42 = tpu.matmul %40, %41, %cst_17 {dimension_numbers = #tpu.dot_dimension_numbers<[1], [0], [0], [1], [0, 0, 1, 1], [], []>} : vector<16x32xbf16>, vector<32x64xbf16>, vector<16x64xf32> -> vector<16x64xf32>
    %43 = vector.extract_strided_slice %3 {offsets = [0, 384], sizes = [16, 64], strides = [1, 1]} : vector<16x640xf32> to vector<16x64xf32>
    %44 = arith.addf %42, %43 : vector<16x64xf32>
    %45 = arith.mulf %44, %44 : vector<16x64xf32>
    %46 = arith.mulf %44, %45 : vector<16x64xf32>
    %cst_18 = arith.constant 4.471500e-02 : f32
    %47 = vector.broadcast %cst_18 : f32 to vector<16x64xf32>
    %48 = arith.mulf %47, %46 : vector<16x64xf32>
    %49 = arith.addf %44, %48 : vector<16x64xf32>
    %cst_19 = arith.constant 0.797884583 : f32
    %50 = vector.broadcast %cst_19 : f32 to vector<16x64xf32>
    %51 = arith.mulf %50, %49 : vector<16x64xf32>
    %52 = math.tanh %51 : vector<16x64xf32>
    %cst_20 = arith.constant 1.000000e+00 : f32
    %53 = vector.broadcast %cst_20 : f32 to vector<16x64xf32>
    %54 = arith.addf %53, %52 : vector<16x64xf32>
    %cst_21 = arith.constant 5.000000e-01 : f32
    %55 = vector.broadcast %cst_21 : f32 to vector<16x64xf32>
    %56 = arith.mulf %55, %54 : vector<16x64xf32>
    %57 = arith.mulf %44, %56 : vector<16x64xf32>
    %58 = arith.truncf %57 : vector<16x64xf32> to vector<16x64xbf16>
    %59 = vector.extract_strided_slice %2 {offsets = [0, 0], sizes = [64, 32], strides = [1, 1]} : vector<192x32xbf16> to vector<64x32xbf16>
    %cst_22 = arith.constant dense<0.000000e+00> : vector<16x32xf32>
    %60 = tpu.matmul %58, %59, %cst_22 {dimension_numbers = #tpu.dot_dimension_numbers<[1], [0], [0], [1], [0, 0, 1, 1], [], []>} : vector<16x64xbf16>, vector<64x32xbf16>, vector<16x32xf32> -> vector<16x32xf32>
    %61 = vector.extract_strided_slice %4 {offsets = [0, 0], sizes = [16, 32], strides = [1, 1]} : vector<64x32xf32> to vector<16x32xf32>
    %62 = arith.addf %60, %61 : vector<16x32xf32>
    %63 = arith.addf %39, %62 : vector<16x32xf32>
    %64 = arith.truncf %63 : vector<16x32xf32> to vector<16x32xbf16>
    %65 = vector.extract_strided_slice %1 {offsets = [0, 512], sizes = [32, 128], strides = [1, 1]} : vector<32x640xbf16> to vector<32x128xbf16>
    %cst_23 = arith.constant dense<0.000000e+00> : vector<16x128xf32>
    %66 = tpu.matmul %64, %65, %cst_23 {dimension_numbers = #tpu.dot_dimension_numbers<[1], [0], [0], [1], [0, 0, 1, 1], [], []>} : vector<16x32xbf16>, vector<32x128xbf16>, vector<16x128xf32> -> vector<16x128xf32>
    %67 = vector.extract_strided_slice %3 {offsets = [0, 512], sizes = [16, 128], strides = [1, 1]} : vector<16x640xf32> to vector<16x128xf32>
    %68 = arith.addf %66, %67 : vector<16x128xf32>
    %69 = arith.mulf %68, %68 : vector<16x128xf32>
    %70 = arith.mulf %68, %69 : vector<16x128xf32>
    %cst_24 = arith.constant 4.471500e-02 : f32
    %71 = vector.broadcast %cst_24 : f32 to vector<16x128xf32>
    %72 = arith.mulf %71, %70 : vector<16x128xf32>
    %73 = arith.addf %68, %72 : vector<16x128xf32>
    %cst_25 = arith.constant 0.797884583 : f32
    %74 = vector.broadcast %cst_25 : f32 to vector<16x128xf32>
    %75 = arith.mulf %74, %73 : vector<16x128xf32>
    %76 = math.tanh %75 : vector<16x128xf32>
    %cst_26 = arith.constant 1.000000e+00 : f32
    %77 = vector.broadcast %cst_26 : f32 to vector<16x128xf32>
    %78 = arith.addf %77, %76 : vector<16x128xf32>
    %cst_27 = arith.constant 5.000000e-01 : f32
    %79 = vector.broadcast %cst_27 : f32 to vector<16x128xf32>
    %80 = arith.mulf %79, %78 : vector<16x128xf32>
    %81 = arith.mulf %68, %80 : vector<16x128xf32>
    %82 = arith.truncf %81 : vector<16x128xf32> to vector<16x128xbf16>
    %83 = vector.extract_strided_slice %2 {offsets = [64, 0], sizes = [128, 32], strides = [1, 1]} : vector<192x32xbf16> to vector<128x32xbf16>
    %cst_28 = arith.constant dense<0.000000e+00> : vector<16x32xf32>
    %84 = tpu.matmul %82, %83, %cst_28 {dimension_numbers = #tpu.dot_dimension_numbers<[1], [0], [0], [1], [0, 0, 1, 1], [], []>} : vector<16x128xbf16>, vector<128x32xbf16>, vector<16x32xf32> -> vector<16x32xf32>
    %85 = vector.extract_strided_slice %4 {offsets = [16, 0], sizes = [16, 32], strides = [1, 1]} : vector<64x32xf32> to vector<16x32xf32>
    %86 = arith.addf %84, %85 : vector<16x32xf32>
    %87 = arith.addf %86, %63 : vector<16x32xf32>
    %cst_29 = arith.constant dense<0.000000e+00> : vector<16xf32>
    %88 = vector.multi_reduction <add>, %87, %cst_29 [1] : vector<16x32xf32> to vector<16xf32>
    %89 = vector.shape_cast %88 : vector<16xf32> to vector<16x1xf32>
    %cst_30 = arith.constant 3.125000e-02 : f32
    %90 = vector.broadcast %cst_30 : f32 to vector<16x1xf32>
    %91 = arith.mulf %89, %90 : vector<16x1xf32>
    %92 = vector.broadcast %91 : vector<16x1xf32> to vector<16x32xf32>
    %93 = arith.subf %87, %92 : vector<16x32xf32>
    %94 = arith.mulf %93, %93 : vector<16x32xf32>
    %cst_31 = arith.constant dense<0.000000e+00> : vector<16xf32>
    %95 = vector.multi_reduction <add>, %94, %cst_31 [1] : vector<16x32xf32> to vector<16xf32>
    %96 = vector.shape_cast %95 : vector<16xf32> to vector<16x1xf32>
    %cst_32 = arith.constant 3.125000e-02 : f32
    %97 = vector.broadcast %cst_32 : f32 to vector<16x1xf32>
    %98 = arith.mulf %96, %97 : vector<16x1xf32>
    %cst_33 = arith.constant 9.99999996E-13 : f32
    %99 = vector.broadcast %cst_33 : f32 to vector<16x1xf32>
    %100 = arith.addf %98, %99 : vector<16x1xf32>
    %101 = math.rsqrt %100 : vector<16x1xf32>
    %102 = vector.broadcast %101 : vector<16x1xf32> to vector<16x32xf32>
    %103 = arith.mulf %93, %102 : vector<16x32xf32>
    %104 = vector.extract_strided_slice %4 {offsets = [32, 0], sizes = [16, 32], strides = [1, 1]} : vector<64x32xf32> to vector<16x32xf32>
    %105 = arith.mulf %103, %104 : vector<16x32xf32>
    %106 = vector.extract_strided_slice %4 {offsets = [48, 0], sizes = [16, 32], strides = [1, 1]} : vector<64x32xf32> to vector<16x32xf32>
    %107 = arith.addf %105, %106 : vector<16x32xf32>
    %c0_34 = arith.constant 0 : index
    %c0_35 = arith.constant 0 : index
    %108 = vector.load %arg8[%c0_34, %c0_35] : memref<16x32xf32, #tpu.memory_space<vmem>>, vector<16x32xf32>
    tpu.vector_store %arg8[%c0_34, %c0_35], %107 {strides = array<i32>} : memref<16x32xf32, #tpu.memory_space<vmem>>, vector<16x32xf32>,
    return
  }
  func.func @transform_0(%arg0: i32) -> (i32, i32) {
    %c0_i32 = arith.constant 0 : i32
    %c0_i32_0 = arith.constant 0 : i32
    %c0_i32_1 = arith.constant 0 : i32
    return %c0_i32, %c0_i32_0 : i32, i32
  }
  func.func @transform_1(%arg0: i32) -> (i32, i32) {
    %c0_i32 = arith.constant 0 : i32
    %c0_i32_0 = arith.constant 0 : i32
    %c0_i32_1 = arith.constant 0 : i32
    return %c0_i32, %c0_i32_0 : i32, i32
  }
  func.func @transform_2(%arg0: i32) -> (i32, i32) {
    %c0_i32 = arith.constant 0 : i32
    %c0_i32_0 = arith.constant 0 : i32
    %c0_i32_1 = arith.constant 0 : i32
    return %c0_i32, %c0_i32_0 : i32, i32
  }
  func.func @transform_3(%arg0: i32) -> (i32, i32) {
    %c0_i32 = arith.constant 0 : i32
    %c0_i32_0 = arith.constant 0 : i32
    %c0_i32_1 = arith.constant 0 : i32
    return %c0_i32, %c0_i32_0 : i32, i32
  }
  func.func @transform_4(%arg0: i32) -> (i32, i32) {
    %c0_i32 = arith.constant 0 : i32
    %c0_i32_0 = arith.constant 0 : i32
    %c0_i32_1 = arith.constant 0 : i32
    return %c0_i32, %c0_i32_0 : i32, i32
  }
  func.func @transform_5(%arg0: i32) -> (i32, i32) {
    %c0_i32 = arith.constant 0 : i32
    %c0_i32_0 = arith.constant 0 : i32
    %c0_i32_1 = arith.constant 0 : i32
    return %c0_i32, %c0_i32_0 : i32, i32
  }
  func.func @transform_6(%arg0: i32) -> (i32, i32) {
    %c0_i32 = arith.constant 0 : i32
    %c0_i32_0 = arith.constant 0 : i32
    %c0_i32_1 = arith.constant 0 : i32
    return %c0_i32, %c0_i32_0 : i32, i32
  }
  func.func @transform_7(%arg0: i32) -> (i32, i32) {
    %c0_i32 = arith.constant 0 : i32
    %c0_i32_0 = arith.constant 0 : i32
    %c0_i32_1 = arith.constant 0 : i32
    return %c0_i32, %c0_i32_0 : i32, i32
  }
}

</mosaic_0001>

<llo_original>
// kernel: tpu_custom_call.1
$region0: #{tpu_custom_call.1}
  #allocation0 [shape = 'u32[]', space=smem, size = 0x4, offset = 0x4, fixed_abs, tag = 'smem constant byte address 0x4 - core index']
  #allocation1 [shape = 'u32[144,128]{1,0:T(1,128)}', space=vmem, size = 0x12000, scoped, tag = 'internal scratch']
  %s0 = inlined_call_operand.vmem [shape: bf16[16,32], index: 0, kind: input, shape index: {}]
  %s1 = inlined_call_operand.vmem [shape: bf16[32,640], index: 1, kind: input, shape index: {}]
  %s2 = inlined_call_operand.vmem [shape: bf16[192,32], index: 2, kind: input, shape index: {}]
  %s3 = inlined_call_operand.vmem [shape: f32[16,640], index: 3, kind: input, shape index: {}]
  %s4 = inlined_call_operand.vmem [shape: f32[64,32], index: 4, kind: input, shape index: {}]
  %s5 = inlined_call_operand.vmem [shape: f32[64,32], index: 5, kind: input, shape index: {}]
  %s6 = inlined_call_operand.vmem [shape: f32[64,16], index: 6, kind: input, shape index: {}]
  %s7 = inlined_call_operand.hbm [shape: f32[16,32], index: 7, kind: output, shape index: {}]
  %s8 = sld [smem:[#allocation0]]
  $region38: #{tpu_custom_call.1} parent=0
    _
  %s10 = ssub.s32 1, %s8
  %s11 = scalar_select 0, %s10, %s8
  $region1: #{tpu_custom_call.1} parent=0
    #allocation2 [shape = 'u8[8192]{0}', space=vmem, size = 0x2000, scoped, tag = 'output window, operand 0, single buffered']
    #allocation3 [shape = 's32[1]{0}', space=sflag, size = 0x4, scoped, tag = 'scoped memory for tpu_custom_call.1']
    %12 = vsyncpa [#allocation3], 0
    // Predicated region
    $region2: #{tpu_custom_call.1} parent=1 // pred_check
      _
    $region3: #{tpu_custom_call.1} parent=1 // pred_check_branch
      %14 = sbr.rel (0) target = $region5
    $region4: #{tpu_custom_call.1} parent=1 // pred_region
      _
    $region5: #{tpu_custom_call.1} parent=1 // pred_fallthru
      _
    // Predicated region
    $region6: #{tpu_custom_call.1} parent=1 // pred_check
      _
    $region7: #{tpu_custom_call.1} parent=1 // pred_check_branch
      %16 = sbr.rel (0) target = $region9
    $region8: #{tpu_custom_call.1} parent=1 // pred_region
      _
    $region9: #{tpu_custom_call.1} parent=1 // pred_fallthru
      _
    // Predicated region
    $region10: #{tpu_custom_call.1} parent=1 // pred_check
      _
    $region11: #{tpu_custom_call.1} parent=1 // pred_check_branch
      %18 = sbr.rel (0) target = $region13
    $region12: #{tpu_custom_call.1} parent=1 // pred_region
      _
    $region13: #{tpu_custom_call.1} parent=1 // pred_fallthru
      _
    // Predicated region
    $region14: #{tpu_custom_call.1} parent=1 // pred_check
      _
    $region15: #{tpu_custom_call.1} parent=1 // pred_check_branch
      %20 = sbr.rel (0) target = $region17
    $region16: #{tpu_custom_call.1} parent=1 // pred_region
      _
    $region17: #{tpu_custom_call.1} parent=1 // pred_fallthru
      _
    // Predicated region
    $region18: #{tpu_custom_call.1} parent=1 // pred_check
      _
    $region19: #{tpu_custom_call.1} parent=1 // pred_check_branch
      %22 = sbr.rel (0) target = $region21
    $region20: #{tpu_custom_call.1} parent=1 // pred_region
      _
    $region21: #{tpu_custom_call.1} parent=1 // pred_fallthru
      _
    // Predicated region
    $region22: #{tpu_custom_call.1} parent=1 // pred_check
      _
    $region23: #{tpu_custom_call.1} parent=1 // pred_check_branch
      %24 = sbr.rel (0) target = $region25
    $region24: #{tpu_custom_call.1} parent=1 // pred_region
      _
    $region25: #{tpu_custom_call.1} parent=1 // pred_fallthru
      _
    // Predicated region
    $region26: #{tpu_custom_call.1} parent=1 // pred_check
      _
    $region27: #{tpu_custom_call.1} parent=1 // pred_check_branch
      %26 = sbr.rel (0) target = $region29
    $region28: #{tpu_custom_call.1} parent=1 // pred_region
      _
    $region29: #{tpu_custom_call.1} parent=1 // pred_fallthru
      _
    %v28 = vld [vmem:[%s0] sm:$0xf]
    %v29 = vld [vmem:[%s0 + $0x4] sm:$0xf]
    %v30 = vld [vmem:[%s1] sm:$0xff]
    %v31 = vld [vmem:[%s1 + $0x8] sm:$0xff]
    %v32 = vld [vmem:[%s1 + $0x10] sm:$0xf]
    %v33 = vld [vmem:[%s1 + $0x14] sm:$0xff]
    %v34 = vld [vmem:[%s1 + $0x1c] sm:$0xff]
    %v35 = vld [vmem:[%s1 + $0x24] sm:$0xf]
    %v36 = vld [vmem:[%s1 + $0x28] sm:$0xff]
    %v37 = vld [vmem:[%s1 + $0x30] sm:$0xff]
    %v38 = vld [vmem:[%s1 + $0x38] sm:$0xf]
    %v39 = vld [vmem:[%s1 + $0x3c] sm:$0xff]
    %v40 = vld [vmem:[%s1 + $0x44] sm:$0xff]
    %v41 = vld [vmem:[%s1 + $0x4c] sm:$0xf]
    %v42 = vld [vmem:[%s2] sm:$0xf]
    %v43 = vld [vmem:[%s2 + $0x4] sm:$0xf]
    %v44 = vld [vmem:[%s2 + $0x8] sm:$0xf]
    %v45 = vld [vmem:[%s2 + $0xc] sm:$0xf]
    %v46 = vld [vmem:[%s2 + $0x10] sm:$0xf]
    %v47 = vld [vmem:[%s2 + $0x14] sm:$0xf]
    %v48 = vld [vmem:[%s2 + $0x18] sm:$0xf]
    %v49 = vld [vmem:[%s2 + $0x1c] sm:$0xf]
    %v50 = vld [vmem:[%s2 + $0x20] sm:$0xf]
    %v51 = vld [vmem:[%s2 + $0x24] sm:$0xf]
    %v52 = vld [vmem:[%s2 + $0x28] sm:$0xf]
    %v53 = vld [vmem:[%s2 + $0x2c] sm:$0xf]
    %v54 = vld [vmem:[%s2 + $0x30] sm:$0xf]
    %v55 = vld [vmem:[%s2 + $0x34] sm:$0xf]
    %v56 = vld [vmem:[%s2 + $0x38] sm:$0xf]
    %v57 = vld [vmem:[%s2 + $0x3c] sm:$0xf]
    %v58 = vld [vmem:[%s2 + $0x40] sm:$0xf]
    %v59 = vld [vmem:[%s2 + $0x44] sm:$0xf]
    %v60 = vld [vmem:[%s2 + $0x48] sm:$0xf]
    %v61 = vld [vmem:[%s2 + $0x4c] sm:$0xf]
    %v62 = vld [vmem:[%s2 + $0x50] sm:$0xf]
    %v63 = vld [vmem:[%s2 + $0x54] sm:$0xf]
    %v64 = vld [vmem:[%s2 + $0x58] sm:$0xf]
    %v65 = vld [vmem:[%s2 + $0x5c] sm:$0xf]
    %v66 = vld [vmem:[%s3] sm:$0xff]
    %v67 = vld [vmem:[%s3 + $0x8] sm:$0xff]
    %v68 = vld [vmem:[%s3 + $0x10] sm:$0xff]
    %v69 = vld [vmem:[%s3 + $0x18] sm:$0xff]
    %v70 = vld [vmem:[%s3 + $0x20] sm:$0xff]
    %v71 = vld [vmem:[%s3 + $0x28] sm:$0xff]
    %v72 = vld [vmem:[%s3 + $0x30] sm:$0xff]
    %v73 = vld [vmem:[%s3 + $0x38] sm:$0xff]
    %v74 = vld [vmem:[%s3 + $0x40] sm:$0xff]
    %v75 = vld [vmem:[%s3 + $0x48] sm:$0xff]
    %v76 = vld [vmem:[%s4] sm:$0xff]
    %v77 = vld [vmem:[%s4 + $0x8] sm:$0xff]
    %v78 = vld [vmem:[%s4 + $0x10] sm:$0xff]
    %v79 = vld [vmem:[%s4 + $0x18] sm:$0xff]
    %v80 = vld [vmem:[%s4 + $0x20] sm:$0xff]
    %v81 = vld [vmem:[%s4 + $0x28] sm:$0xff]
    %v82 = vld [vmem:[%s4 + $0x30] sm:$0xff]
    %v83 = vld [vmem:[%s4 + $0x38] sm:$0xff]
    %v84 = vld [vmem:[%s5] sm:$0xff]
    %v85 = vld [vmem:[%s5 + $0x8] sm:$0xff]
    %v86 = vld [vmem:[%s5 + $0x10] sm:$0xff]
    %v87 = vld [vmem:[%s5 + $0x18] sm:$0xff]
    %v88 = vld [vmem:[%s5 + $0x20] sm:$0xff]
    %v89 = vld [vmem:[%s5 + $0x28] sm:$0xff]
    %v90 = vld [vmem:[%s5 + $0x30] sm:$0xff]
    %v91 = vld [vmem:[%s5 + $0x38] sm:$0xff]
    %v92 = vld [vmem:[%s6] sm:$0xff]
    %v93 = vld [vmem:[%s6 + $0x8] sm:$0xff]
    %v94 = vld [vmem:[%s6 + $0x10] sm:$0xff]
    %v95 = vld [vmem:[%s6 + $0x18] sm:$0xff]
    %v96 = vld [vmem:[%s6 + $0x20] sm:$0xff]
    %v97 = vld [vmem:[%s6 + $0x28] sm:$0xff]
    %v98 = vld [vmem:[%s6 + $0x30] sm:$0xff]
    %v99 = vld [vmem:[%s6 + $0x38] sm:$0xff]
    %v102 = vunpack.c.l.b16 %v28
    %v103 = vunpack.c.l.b16 %v29
    %v104 = vpack.c.b16 %v103, %v102
    %v113 = vunpack.c.l.b16 %v30
    %v114 = vunpack.c.h.b16 %v30
    %v115 = vunpack.c.l.b16 %v31
    %v116 = vunpack.c.l.b16 %v33
    %v117 = vunpack.c.h.b16 %v33
    %v118 = vunpack.c.l.b16 %v34
    %v119 = vunpack.c.l.b16 %v36
    %v120 = vunpack.c.h.b16 %v36
    %v121 = vunpack.c.l.b16 %v37
    %v122 = vunpack.c.l.b16 %v39
    %v123 = vunpack.c.h.b16 %v39
    %v124 = vunpack.c.l.b16 %v40
    %v125 = vpack.c.b16 %v116, %v113
    %v126 = vpack.c.b16 %v117, %v114
    %v127 = vpack.c.b16 %v118, %v115
    %v128 = vpack.c.b16 %v122, %v119
    %v129 = vpack.c.b16 %v123, %v120
    %v130 = vpack.c.b16 %v124, %v121
    %vm137 = vcmask 261120
    %v139 = vsel %vm137, %v104, 0
    %141 = vmatprep.subr.bf16.mxu0 %v126
    %142 = vmatpush1.bf16.msra.mxu0 %v125
    %143 = vmatprep.subr.bf16.mxu0 %v129
    %144 = vmatpush1.bf16.msra.mxu0 %v128
    %145 = vmatprep.subr.bf16.mxu0 0
    %146 = vmatpush1.bf16.msra.mxu0 0
    %147 = vmatprep.subr.bf16.mxu0 0
    %148 = vmatpush1.bf16.msra.mxu0 0
    %149 = vmatprep.subr.bf16.mxu0 0
    %150 = vmatpush1.bf16.msra.mxu0 0
    %151 = vmatprep.subr.bf16.mxu0 0
    %152 = vmatpush1.bf16.msra.mxu0 0
    %153 = vmatprep.subr.bf16.mxu0 0
    %154 = vmatpush1.bf16.msra.mxu0 0
    %155 = vmatprep.subr.bf16.mxu0 0
    %156 = vmatpush1.bf16.msra.mxu0 0
    %157 = vmatprep.subr.bf16.mxu0 0
    %158 = vmatpush1.bf16.msra.mxu0 0
    %159 = vmatprep.subr.bf16.mxu0 0
    %160 = vmatpush1.bf16.msra.mxu0 0
    %161 = vmatprep.subr.bf16.mxu0 0
    %162 = vmatpush1.bf16.msra.mxu0 0
    %163 = vmatprep.subr.bf16.mxu0 0
    %164 = vmatpush1.bf16.msra.mxu0 0
    %165 = vmatprep.subr.bf16.mxu0 0
    %166 = vmatpush1.bf16.msra.mxu0 0
    %167 = vmatprep.subr.bf16.mxu0 0
    %168 = vmatpush1.bf16.msra.mxu0 0
    %169 = vmatprep.subr.bf16.mxu0 0
    %170 = vmatpush1.bf16.msra.mxu0 0
    %171 = vmatprep.subr.bf16.mxu0 0
    %172 = vmatpush1.bf16.msra.mxu0 0
    %173 = vmatprep.mubr.bf16.mxu0 0
    %174 = vmatmul.mubr.bf16.gmra.mrb[0].mxu0 %v139
    %v175 = vpop.f32.mrb[0].mxu0
    %v176 = vadd.f32 %v66, %v175
    %v177 = vpop.f32.mrb[0].mxu0
    %v178 = vadd.f32 %v67, %v177
    %v179 = vpop.f32.mrb[0].mxu0
    %v180 = vadd.f32 %v71, %v179
    %v181 = vpop.f32.mrb[0].mxu0
    %v182 = vadd.f32 %v72, %v181
    %183 = vdwg.mxu0
    %184 = vmatprep.subr.bf16.mxu0 0
    %185 = vmatpush1.bf16.msra.mxu0 %v127
    %186 = vmatprep.subr.bf16.mxu0 0
    %187 = vmatpush1.bf16.msra.mxu0 %v130
    %188 = vmatprep.subr.bf16.mxu0 0
    %189 = vmatpush1.bf16.msra.mxu0 0
    %190 = vmatprep.subr.bf16.mxu0 0
    %191 = vmatpush1.bf16.msra.mxu0 0
    %192 = vmatprep.subr.bf16.mxu0 0
    %193 = vmatpush1.bf16.msra.mxu0 0
    %194 = vmatprep.subr.bf16.mxu0 0
    %195 = vmatpush1.bf16.msra.mxu0 0
    %196 = vmatprep.subr.bf16.mxu0 0
    %197 = vmatpush1.bf16.msra.mxu0 0
    %198 = vmatprep.subr.bf16.mxu0 0
    %199 = vmatpush1.bf16.msra.mxu0 0
    %200 = vmatprep.subr.bf16.mxu0 0
    %201 = vmatpush1.bf16.msra.mxu0 0
    %202 = vmatprep.subr.bf16.mxu0 0
    %203 = vmatpush1.bf16.msra.mxu0 0
    %204 = vmatprep.subr.bf16.mxu0 0
    %205 = vmatpush1.bf16.msra.mxu0 0
    %206 = vmatprep.subr.bf16.mxu0 0
    %207 = vmatpush1.bf16.msra.mxu0 0
    %208 = vmatprep.subr.bf16.mxu0 0
    %209 = vmatpush1.bf16.msra.mxu0 0
    %210 = vmatprep.subr.bf16.mxu0 0
    %211 = vmatpush1.bf16.msra.mxu0 0
    %212 = vmatprep.subr.bf16.mxu0 0
    %213 = vmatpush1.bf16.msra.mxu0 0
    %214 = vmatprep.subr.bf16.mxu0 0
    %215 = vmatpush1.bf16.msra.mxu0 0
    %216 = vmatprep.mubr.bf16.mxu0 0
    %217 = vmatmul.mubr.bf16.gmra.mrb[0].mxu0 %v139
    %v218 = vpop.f32.mrb[0].mxu0
    %v219 = vadd.f32 %v68, %v218
    %v220 = vpop.f32.mrb[0].mxu0
    %v221 = vpop.f32.mrb[0].mxu0
    %v222 = vadd.f32 %v73, %v221
    %v223 = vpop.f32.mrb[0].mxu0
    %224 = vdwg.mxu0
    %v225 = vmul.f32 %v176, %v84
    %v226 = vmul.f32 %v180, %v85
    %v227 = vmul.f32 %v176, %v86
    %v228 = vmul.f32 %v180, %v87
    %v229 = vmul.f32 %v176, %v88
    %v230 = vmul.f32 %v180, %v89
    %v231 = vmul.f32 %v176, %v90
    %v232 = vmul.f32 %v180, %v91
    %v233 = vpack.c.bf16 %v226, %v225
    %v234 = vpack.c.bf16 %v228, %v227
    %v235 = vpack.c.bf16 %v230, %v229
    %v236 = vpack.c.bf16 %v232, %v231
    %v237 = vpack.c.bf16 %v182, %v178
    %v239 = vsel %vm137, %v233, 0
    %v242 = vsel %vm137, %v234, 0
    %v245 = vsel %vm137, %v235, 0
    %v248 = vsel %vm137, %v236, 0
    %v251 = vsel %vm137, %v237, 0
    %253 = vmatprep.subr.bf16.mxu0 0
    %254 = vmatpush1.bf16.xpose.msra.mxu0 %v251
    %255 = vmatprep.subr.bf16.mxu0 0
    %256 = vmatpush1.bf16.xpose.msra.mxu0 0
    %257 = vmatprep.subr.bf16.mxu0 0
    %258 = vmatpush1.bf16.xpose.msra.mxu0 0
    %259 = vmatprep.subr.bf16.mxu0 0
    %260 = vmatpush1.bf16.xpose.msra.mxu0 0
    %261 = vmatprep.subr.bf16.mxu0 0
    %262 = vmatpush1.bf16.xpose.msra.mxu0 0
    %263 = vmatprep.subr.bf16.mxu0 0
    %264 = vmatpush1.bf16.xpose.msra.mxu0 0
    %265 = vmatprep.subr.bf16.mxu0 0
    %266 = vmatpush1.bf16.xpose.msra.mxu0 0
    %267 = vmatprep.subr.bf16.mxu0 0
    %268 = vmatpush1.bf16.xpose.msra.mxu0 0
    %269 = vmatprep.subr.bf16.mxu0 0
    %270 = vmatpush1.bf16.xpose.msra.mxu0 0
    %271 = vmatprep.subr.bf16.mxu0 0
    %272 = vmatpush1.bf16.xpose.msra.mxu0 0
    %273 = vmatprep.subr.bf16.mxu0 0
    %274 = vmatpush1.bf16.xpose.msra.mxu0 0
    %275 = vmatprep.subr.bf16.mxu0 0
    %276 = vmatpush1.bf16.xpose.msra.mxu0 0
    %277 = vmatprep.subr.bf16.mxu0 0
    %278 = vmatpush1.bf16.xpose.msra.mxu0 0
    %279 = vmatprep.subr.bf16.mxu0 0
    %280 = vmatpush1.bf16.xpose.msra.mxu0 0
    %281 = vmatprep.subr.bf16.mxu0 0
    %282 = vmatpush1.bf16.xpose.msra.mxu0 0
    %283 = vmatprep.subr.bf16.mxu0 0
    %284 = vmatpush1.bf16.xpose.msra.mxu0 0
    %285 = vmatprep.mubr.bf16.mxu0 0
    %286 = vmatmul.mubr.bf16.gmra.mrb[0].mxu0 %v239
    %v287 = vpop.f32.mrb[0].mxu0
    %v288 = vadd.f32 %v92, %v287
    %v289 = vpop.f32.mrb[0].mxu0
    %v290 = vpop.f32.mrb[0].mxu0
    %v291 = vadd.f32 %v93, %v290
    %v292 = vpop.f32.mrb[0].mxu0
    %293 = vmatprep.mubr.bf16.mxu0 0
    %294 = vmatmul.mubr.bf16.gmra.mrb[0].mxu0 %v242
    %v295 = vpop.f32.mrb[0].mxu0
    %v296 = vadd.f32 %v94, %v295
    %v297 = vpop.f32.mrb[0].mxu0
    %v298 = vpop.f32.mrb[0].mxu0
    %v299 = vadd.f32 %v95, %v298
    %v300 = vpop.f32.mrb[0].mxu0
    %301 = vmatprep.mubr.bf16.mxu0 0
    %302 = vmatmul.mubr.bf16.gmra.mrb[0].mxu0 %v245
    %v303 = vpop.f32.mrb[0].mxu0
    %v304 = vadd.f32 %v96, %v303
    %v305 = vpop.f32.mrb[0].mxu0
    %v306 = vpop.f32.mrb[0].mxu0
    %v307 = vadd.f32 %v97, %v306
    %v308 = vpop.f32.mrb[0].mxu0
    %309 = vmatprep.mubr.bf16.mxu0 0
    %310 = vmatmul.mubr.bf16.gmra.mrb[0].mxu0 %v248
    %v311 = vpop.f32.mrb[0].mxu0
    %v312 = vadd.f32 %v98, %v311
    %v313 = vpop.f32.mrb[0].mxu0
    %v314 = vpop.f32.mrb[0].mxu0
    %v315 = vadd.f32 %v99, %v314
    %v316 = vpop.f32.mrb[0].mxu0
    %317 = vdwg.mxu0
    %vm318 = vcmask 130048
    %v319 = vsel %vm318, %v288, -inf
    %320 = vmax.xlane.f32.xlu0 %v319
    %v321 = vpop.xlane.xlu0 %320
    %v322 = vsel %vm318, %v291, -inf
    %323 = vmax.xlane.f32.xlu0 %v322
    %v324 = vpop.xlane.xlu0 %323
    %v325 = vsel %vm318, %v296, -inf
    %326 = vmax.xlane.f32.xlu0 %v325
    %v327 = vpop.xlane.xlu0 %326
    %v328 = vsel %vm318, %v299, -inf
    %329 = vmax.xlane.f32.xlu0 %v328
    %v330 = vpop.xlane.xlu0 %329
    %v331 = vsel %vm318, %v304, -inf
    %332 = vmax.xlane.f32.xlu0 %v331
    %v333 = vpop.xlane.xlu0 %332
    %v334 = vsel %vm318, %v307, -inf
    %335 = vmax.xlane.f32.xlu0 %v334
    %v336 = vpop.xlane.xlu0 %335
    %v337 = vsel %vm318, %v312, -inf
    %338 = vmax.xlane.f32.xlu0 %v337
    %v339 = vpop.xlane.xlu0 %338
    %v340 = vsel %vm318, %v315, -inf
    %341 = vmax.xlane.f32.xlu0 %v340
    %v342 = vpop.xlane.xlu0 %341
    %v343 = vsub.f32 %v288, %v321
    %v344 = vsub.f32 %v291, %v324
    %v345 = vsub.f32 %v296, %v327
    %v346 = vsub.f32 %v299, %v330
    %v347 = vsub.f32 %v304, %v333
    %v348 = vsub.f32 %v307, %v336
    %v349 = vsub.f32 %v312, %v339
    %v350 = vsub.f32 %v315, %v342
    %v351 = vmul.f32 %v343, 1.442695
    %v352 = vpow.pop %v351
    %v353 = vmul.f32 %v344, 1.442695
    %v354 = vpow.pop %v353
    %v355 = vmul.f32 %v345, 1.442695
    %v356 = vpow.pop %v355
    %v357 = vmul.f32 %v346, 1.442695
    %v358 = vpow.pop %v357
    %v359 = vmul.f32 %v347, 1.442695
    %v360 = vpow.pop %v359
    %v361 = vmul.f32 %v348, 1.442695
    %v362 = vpow.pop %v361
    %v363 = vmul.f32 %v349, 1.442695
    %v364 = vpow.pop %v363
    %v365 = vmul.f32 %v350, 1.442695
    %v366 = vpow.pop %v365
    %v367 = vsel %vm318, %v352, 0.0
    %368 = vadd.xlane.f32.xlu0 %v367
    %v369 = vpop.xlane.xlu0 %368
    %v370 = vsel %vm318, %v354, 0.0
    %371 = vadd.xlane.f32.xlu0 %v370
    %v372 = vpop.xlane.xlu0 %371
    %v373 = vsel %vm318, %v356, 0.0
    %374 = vadd.xlane.f32.xlu0 %v373
    %v375 = vpop.xlane.xlu0 %374
    %v376 = vsel %vm318, %v358, 0.0
    %377 = vadd.xlane.f32.xlu0 %v376
    %v378 = vpop.xlane.xlu0 %377
    %v379 = vsel %vm318, %v360, 0.0
    %380 = vadd.xlane.f32.xlu0 %v379
    %v381 = vpop.xlane.xlu0 %380
    %v382 = vsel %vm318, %v362, 0.0
    %383 = vadd.xlane.f32.xlu0 %v382
    %v384 = vpop.xlane.xlu0 %383
    %v385 = vsel %vm318, %v364, 0.0
    %386 = vadd.xlane.f32.xlu0 %v385
    %v387 = vpop.xlane.xlu0 %386
    %v388 = vsel %vm318, %v366, 0.0
    %389 = vadd.xlane.f32.xlu0 %v388
    %v390 = vpop.xlane.xlu0 %389
    %v391 = vrcp.pop %v369
    %v392 = vmul.f32 %v352, %v391
    %v393 = vrcp.pop %v372
    %v394 = vmul.f32 %v354, %v393
    %v395 = vrcp.pop %v375
    %v396 = vmul.f32 %v356, %v395
    %v397 = vrcp.pop %v378
    %v398 = vmul.f32 %v358, %v397
    %v399 = vrcp.pop %v381
    %v400 = vmul.f32 %v360, %v399
    %v401 = vrcp.pop %v384
    %v402 = vmul.f32 %v362, %v401
    %v403 = vrcp.pop %v387
    %v404 = vmul.f32 %v364, %v403
    %v405 = vrcp.pop %v390
    %v406 = vmul.f32 %v366, %v405
    %v407 = vpack.c.bf16 %v394, %v392
    %v408 = vpack.c.bf16 %v398, %v396
    %v409 = vpack.c.bf16 %v402, %v400
    %v410 = vpack.c.bf16 %v406, %v404
    %v411 = vpack.c.bf16 %v222, %v219
    %v413 = vsel %vm318, %v407, 0
    %v416 = vsel %vm318, %v408, 0
    %v419 = vsel %vm318, %v409, 0
    %v422 = vsel %vm318, %v410, 0
    %424 = vmatprep.subr.bf16.mxu0 0
    %425 = vmatpush1.bf16.msra.mxu0 %v411
    %426 = vmatprep.subr.bf16.mxu0 0
    %427 = vmatpush1.bf16.msra.mxu0 0
    %428 = vmatprep.subr.bf16.mxu0 0
    %429 = vmatpush1.bf16.msra.mxu0 0
    %430 = vmatprep.subr.bf16.mxu0 0
    %431 = vmatpush1.bf16.msra.mxu0 0
    %432 = vmatprep.subr.bf16.mxu0 0
    %433 = vmatpush1.bf16.msra.mxu0 0
    %434 = vmatprep.subr.bf16.mxu0 0
    %435 = vmatpush1.bf16.msra.mxu0 0
    %436 = vmatprep.subr.bf16.mxu0 0
    %437 = vmatpush1.bf16.msra.mxu0 0
    %438 = vmatprep.subr.bf16.mxu0 0
    %439 = vmatpush1.bf16.msra.mxu0 0
    %440 = vmatprep.subr.bf16.mxu0 0
    %441 = vmatpush1.bf16.msra.mxu0 0
    %442 = vmatprep.subr.bf16.mxu0 0
    %443 = vmatpush1.bf16.msra.mxu0 0
    %444 = vmatprep.subr.bf16.mxu0 0
    %445 = vmatpush1.bf16.msra.mxu0 0
    %446 = vmatprep.subr.bf16.mxu0 0
    %447 = vmatpush1.bf16.msra.mxu0 0
    %448 = vmatprep.subr.bf16.mxu0 0
    %449 = vmatpush1.bf16.msra.mxu0 0
    %450 = vmatprep.subr.bf16.mxu0 0
    %451 = vmatpush1.bf16.msra.mxu0 0
    %452 = vmatprep.subr.bf16.mxu0 0
    %453 = vmatpush1.bf16.msra.mxu0 0
    %454 = vmatprep.subr.bf16.mxu0 0
    %455 = vmatpush1.bf16.msra.mxu0 0
    %456 = vmatprep.mubr.bf16.mxu0 0
    %457 = vmatmul.mubr.bf16.gmra.mrb[0].mxu0 %v413
    %v458 = vpop.f32.mrb[0].mxu0
    %v459 = vadd.f32 0.0, %v458
    %v460 = vpop.f32.mrb[0].mxu0
    %v461 = vpop.f32.mrb[0].mxu0
    %v462 = vadd.f32 0.0, %v461
    %v463 = vpop.f32.mrb[0].mxu0
    %464 = vmatprep.mubr.bf16.mxu0 0
    %465 = vmatmul.mubr.bf16.gmra.mrb[0].mxu0 %v416
    %v466 = vpop.f32.mrb[0].mxu0
    %v467 = vadd.f32 0.0, %v466
    %v468 = vpop.f32.mrb[0].mxu0
    %v469 = vpop.f32.mrb[0].mxu0
    %v470 = vadd.f32 0.0, %v469
    %v471 = vpop.f32.mrb[0].mxu0
    %472 = vmatprep.mubr.bf16.mxu0 0
    %473 = vmatmul.mubr.bf16.gmra.mrb[0].mxu0 %v419
    %v474 = vpop.f32.mrb[0].mxu0
    %v475 = vadd.f32 0.0, %v474
    %v476 = vpop.f32.mrb[0].mxu0
    %v477 = vpop.f32.mrb[0].mxu0
    %v478 = vadd.f32 0.0, %v477
    %v479 = vpop.f32.mrb[0].mxu0
    %480 = vmatprep.mubr.bf16.mxu0 0
    %481 = vmatmul.mubr.bf16.gmra.mrb[0].mxu0 %v422
    %v482 = vpop.f32.mrb[0].mxu0
    %v483 = vadd.f32 0.0, %v482
    %v484 = vpop.f32.mrb[0].mxu0
    %v485 = vpop.f32.mrb[0].mxu0
    %v486 = vadd.f32 0.0, %v485
    %v487 = vpop.f32.mrb[0].mxu0
    %488 = vdwg.mxu0
    %v489 = vmul.f32 %v459, %v84
    %v490 = vmul.f32 %v462, %v85
    %v491 = vmul.f32 %v467, %v86
    %v492 = vmul.f32 %v470, %v87
    %v493 = vmul.f32 %v475, %v88
    %v494 = vmul.f32 %v478, %v89
    %v495 = vmul.f32 %v483, %v90
    %v496 = vmul.f32 %v486, %v91
    %v497 = vadd.f32 %v489, %v491
    %v498 = vadd.f32 %v490, %v492
    %v499 = vadd.f32 %v497, %v493
    %v500 = vadd.f32 %v498, %v494
    %v501 = vadd.f32 %v499, %v495
    %v502 = vadd.f32 %v500, %v496
    %v503 = vpack.c.bf16 %v502, %v501
    %v504 = vunpack.c.h.b16 %v31
    %v505 = vunpack.c.h.b16 %v34
    %v506 = vunpack.c.h.b16 %v37
    %v507 = vunpack.c.h.b16 %v40
    %v508 = vpack.c.b16 %v505, %v504
    %v509 = vpack.c.b16 %v507, %v506
    %v513 = vsel %vm137, %v503, 0
    %515 = vmatprep.subr.bf16.mxu0 0
    %516 = vmatpush1.bf16.msra.mxu0 %v508
    %517 = vmatprep.subr.bf16.mxu0 0
    %518 = vmatpush1.bf16.msra.mxu0 %v509
    %519 = vmatprep.subr.bf16.mxu0 0
    %520 = vmatpush1.bf16.msra.mxu0 0
    %521 = vmatprep.subr.bf16.mxu0 0
    %522 = vmatpush1.bf16.msra.mxu0 0
    %523 = vmatprep.subr.bf16.mxu0 0
    %524 = vmatpush1.bf16.msra.mxu0 0
    %525 = vmatprep.subr.bf16.mxu0 0
    %526 = vmatpush1.bf16.msra.mxu0 0
    %527 = vmatprep.subr.bf16.mxu0 0
    %528 = vmatpush1.bf16.msra.mxu0 0
    %529 = vmatprep.subr.bf16.mxu0 0
    %530 = vmatpush1.bf16.msra.mxu0 0
    %531 = vmatprep.subr.bf16.mxu0 0
    %532 = vmatpush1.bf16.msra.mxu0 0
    %533 = vmatprep.subr.bf16.mxu0 0
    %534 = vmatpush1.bf16.msra.mxu0 0
    %535 = vmatprep.subr.bf16.mxu0 0
    %536 = vmatpush1.bf16.msra.mxu0 0
    %537 = vmatprep.subr.bf16.mxu0 0
    %538 = vmatpush1.bf16.msra.mxu0 0
    %539 = vmatprep.subr.bf16.mxu0 0
    %540 = vmatpush1.bf16.msra.mxu0 0
    %541 = vmatprep.subr.bf16.mxu0 0
    %542 = vmatpush1.bf16.msra.mxu0 0
    %543 = vmatprep.subr.bf16.mxu0 0
    %544 = vmatpush1.bf16.msra.mxu0 0
    %545 = vmatprep.subr.bf16.mxu0 0
    %546 = vmatpush1.bf16.msra.mxu0 0
    %547 = vmatprep.mubr.bf16.mxu0 0
    %548 = vmatmul.mubr.bf16.gmra.mrb[0].mxu0 %v513
    %v549 = vpop.f32.mrb[0].mxu0
    %v550 = vadd.f32 %v69, %v549
    %v551 = vpop.f32.mrb[0].mxu0
    %v552 = vpop.f32.mrb[0].mxu0
    %v553 = vadd.f32 %v74, %v552
    %v554 = vpop.f32.mrb[0].mxu0
    %555 = vdwg.mxu0
    %v556 = vmul.f32 %v550, %v550
    %v557 = vmul.f32 %v553, %v553
    %v558 = vmul.f32 %v550, %v556
    %v559 = vmul.f32 %v553, %v557
    %v560 = vmul.f32 %v558, 0.044715
    %v561 = vmul.f32 %v559, 0.044715
    %v562 = vadd.f32 %v550, %v560
    %v563 = vadd.f32 %v553, %v561
    %v564 = vmul.f32 %v562, 0.7978846
    %v565 = vmul.f32 %v563, 0.7978846
    %v566 = vtanh.pop %v564
    %v567 = vtanh.pop %v565
    %v568 = vadd.f32 %v566, 1.0
    %v569 = vadd.f32 %v567, 1.0
    %v570 = vmul.f32 %v568, 0.5
    %v571 = vmul.f32 %v569, 0.5
    %v572 = vmul.f32 %v550, %v570
    %v573 = vmul.f32 %v553, %v571
    %v574 = vpack.c.bf16 %v573, %v572
    %v583 = vunpack.c.l.b16 %v42
    %v584 = vunpack.c.l.b16 %v43
    %v585 = vunpack.c.l.b16 %v44
    %v586 = vunpack.c.l.b16 %v45
    %v587 = vunpack.c.l.b16 %v46
    %v588 = vunpack.c.l.b16 %v47
    %v589 = vunpack.c.l.b16 %v48
    %v590 = vunpack.c.l.b16 %v49
    %v591 = vpack.c.b16 %v584, %v583
    %v592 = vpack.c.b16 %v586, %v585
    %v593 = vpack.c.b16 %v588, %v587
    %v594 = vpack.c.b16 %v590, %v589
    %vm599 = vcmask 523264
    %v601 = vsel %vm599, %v574, 0
    %603 = vmatprep.subr.bf16.mxu0 0
    %604 = vmatpush1.bf16.msra.mxu0 %v591
    %605 = vmatprep.subr.bf16.mxu0 0
    %606 = vmatpush1.bf16.msra.mxu0 %v592
    %607 = vmatprep.subr.bf16.mxu0 0
    %608 = vmatpush1.bf16.msra.mxu0 %v593
    %609 = vmatprep.subr.bf16.mxu0 0
    %610 = vmatpush1.bf16.msra.mxu0 %v594
    %611 = vmatprep.subr.bf16.mxu0 0
    %612 = vmatpush1.bf16.msra.mxu0 0
    %613 = vmatprep.subr.bf16.mxu0 0
    %614 = vmatpush1.bf16.msra.mxu0 0
    %615 = vmatprep.subr.bf16.mxu0 0
    %616 = vmatpush1.bf16.msra.mxu0 0
    %617 = vmatprep.subr.bf16.mxu0 0
    %618 = vmatpush1.bf16.msra.mxu0 0
    %619 = vmatprep.subr.bf16.mxu0 0
    %620 = vmatpush1.bf16.msra.mxu0 0
    %621 = vmatprep.subr.bf16.mxu0 0
    %622 = vmatpush1.bf16.msra.mxu0 0
    %623 = vmatprep.subr.bf16.mxu0 0
    %624 = vmatpush1.bf16.msra.mxu0 0
    %625 = vmatprep.subr.bf16.mxu0 0
    %626 = vmatpush1.bf16.msra.mxu0 0
    %627 = vmatprep.subr.bf16.mxu0 0
    %628 = vmatpush1.bf16.msra.mxu0 0
    %629 = vmatprep.subr.bf16.mxu0 0
    %630 = vmatpush1.bf16.msra.mxu0 0
    %631 = vmatprep.subr.bf16.mxu0 0
    %632 = vmatpush1.bf16.msra.mxu0 0
    %633 = vmatprep.subr.bf16.mxu0 0
    %634 = vmatpush1.bf16.msra.mxu0 0
    %635 = vmatprep.mubr.bf16.mxu0 0
    %636 = vmatmul.mubr.bf16.gmra.mrb[0].mxu0 %v601
    %v637 = vpop.f32.mrb[0].mxu0
    %v638 = vadd.f32 %v76, %v637
    %v639 = vpop.f32.mrb[0].mxu0
    %v640 = vpop.f32.mrb[0].mxu0
    %v641 = vadd.f32 %v77, %v640
    %v642 = vpop.f32.mrb[0].mxu0
    %643 = vdwg.mxu0
    %v644 = vadd.f32 %v501, %v638
    %v645 = vadd.f32 %v502, %v641
    %v646 = vpack.c.bf16 %v645, %v644
    %v651 = vunpack.c.l.b16 %v32
    %v652 = vunpack.c.l.b16 %v35
    %v653 = vunpack.c.l.b16 %v38
    %v654 = vunpack.c.l.b16 %v41
    %v655 = vpack.c.b16 %v652, %v651
    %v656 = vpack.c.b16 %v654, %v653
    %v660 = vsel %vm137, %v646, 0
    %662 = vmatprep.subr.bf16.mxu0 0
    %663 = vmatpush1.bf16.msra.mxu0 %v655
    %664 = vmatprep.subr.bf16.mxu0 0
    %665 = vmatpush1.bf16.msra.mxu0 %v656
    %666 = vmatprep.subr.bf16.mxu0 0
    %667 = vmatpush1.bf16.msra.mxu0 0
    %668 = vmatprep.subr.bf16.mxu0 0
    %669 = vmatpush1.bf16.msra.mxu0 0
    %670 = vmatprep.subr.bf16.mxu0 0
    %671 = vmatpush1.bf16.msra.mxu0 0
    %672 = vmatprep.subr.bf16.mxu0 0
    %673 = vmatpush1.bf16.msra.mxu0 0
    %674 = vmatprep.subr.bf16.mxu0 0
    %675 = vmatpush1.bf16.msra.mxu0 0
    %676 = vmatprep.subr.bf16.mxu0 0
    %677 = vmatpush1.bf16.msra.mxu0 0
    %678 = vmatprep.subr.bf16.mxu0 0
    %679 = vmatpush1.bf16.msra.mxu0 0
    %680 = vmatprep.subr.bf16.mxu0 0
    %681 = vmatpush1.bf16.msra.mxu0 0
    %682 = vmatprep.subr.bf16.mxu0 0
    %683 = vmatpush1.bf16.msra.mxu0 0
    %684 = vmatprep.subr.bf16.mxu0 0
    %685 = vmatpush1.bf16.msra.mxu0 0
    %686 = vmatprep.subr.bf16.mxu0 0
    %687 = vmatpush1.bf16.msra.mxu0 0
    %688 = vmatprep.subr.bf16.mxu0 0
    %689 = vmatpush1.bf16.msra.mxu0 0
    %690 = vmatprep.subr.bf16.mxu0 0
    %691 = vmatpush1.bf16.msra.mxu0 0
    %692 = vmatprep.subr.bf16.mxu0 0
    %693 = vmatpush1.bf16.msra.mxu0 0
    %694 = vmatprep.mubr.bf16.mxu0 0
    %695 = vmatmul.mubr.bf16.gmra.mrb[0].mxu0 %v660
    %v696 = vpop.f32.mrb[0].mxu0
    %v697 = vadd.f32 %v70, %v696
    %v698 = vpop.f32.mrb[0].mxu0
    %v699 = vpop.f32.mrb[0].mxu0
    %v700 = vadd.f32 %v75, %v699
    %v701 = vpop.f32.mrb[0].mxu0
    %702 = vdwg.mxu0
    %v703 = vmul.f32 %v697, %v697
    %v704 = vmul.f32 %v700, %v700
    %v705 = vmul.f32 %v697, %v703
    %v706 = vmul.f32 %v700, %v704
    %v707 = vmul.f32 %v705, 0.044715
    %v708 = vmul.f32 %v706, 0.044715
    %v709 = vadd.f32 %v697, %v707
    %v710 = vadd.f32 %v700, %v708
    %v711 = vmul.f32 %v709, 0.7978846
    %v712 = vmul.f32 %v710, 0.7978846
    %v713 = vtanh.pop %v711
    %v714 = vtanh.pop %v712
    %v715 = vadd.f32 %v713, 1.0
    %v716 = vadd.f32 %v714, 1.0
    %v717 = vmul.f32 %v715, 0.5
    %v718 = vmul.f32 %v716, 0.5
    %v719 = vmul.f32 %v697, %v717
    %v720 = vmul.f32 %v700, %v718
    %v721 = vpack.c.bf16 %v720, %v719
    %v738 = vunpack.c.l.b16 %v50
    %v739 = vunpack.c.l.b16 %v51
    %v740 = vunpack.c.l.b16 %v52
    %v741 = vunpack.c.l.b16 %v53
    %v742 = vunpack.c.l.b16 %v54
    %v743 = vunpack.c.l.b16 %v55
    %v744 = vunpack.c.l.b16 %v56
    %v745 = vunpack.c.l.b16 %v57
    %v746 = vunpack.c.l.b16 %v58
    %v747 = vunpack.c.l.b16 %v59
    %v748 = vunpack.c.l.b16 %v60
    %v749 = vunpack.c.l.b16 %v61
    %v750 = vunpack.c.l.b16 %v62
    %v751 = vunpack.c.l.b16 %v63
    %v752 = vunpack.c.l.b16 %v64
    %v753 = vunpack.c.l.b16 %v65
    %v754 = vpack.c.b16 %v739, %v738
    %v755 = vpack.c.b16 %v741, %v740
    %v756 = vpack.c.b16 %v743, %v742
    %v757 = vpack.c.b16 %v745, %v744
    %v758 = vpack.c.b16 %v747, %v746
    %v759 = vpack.c.b16 %v749, %v748
    %v760 = vpack.c.b16 %v751, %v750
    %v761 = vpack.c.b16 %v753, %v752
    %770 = vmatprep.subr.bf16.mxu0 0
    %771 = vmatpush1.bf16.msra.mxu0 %v754
    %772 = vmatprep.subr.bf16.mxu0 0
    %773 = vmatpush1.bf16.msra.mxu0 %v755
    %774 = vmatprep.subr.bf16.mxu0 0
    %775 = vmatpush1.bf16.msra.mxu0 %v756
    %776 = vmatprep.subr.bf16.mxu0 0
    %777 = vmatpush1.bf16.msra.mxu0 %v757
    %778 = vmatprep.subr.bf16.mxu0 0
    %779 = vmatpush1.bf16.msra.mxu0 %v758
    %780 = vmatprep.subr.bf16.mxu0 0
    %781 = vmatpush1.bf16.msra.mxu0 %v759
    %782 = vmatprep.subr.bf16.mxu0 0
    %783 = vmatpush1.bf16.msra.mxu0 %v760
    %784 = vmatprep.subr.bf16.mxu0 0
    %785 = vmatpush1.bf16.msra.mxu0 %v761
    %786 = vmatprep.subr.bf16.mxu0 0
    %787 = vmatpush1.bf16.msra.mxu0 0
    %788 = vmatprep.subr.bf16.mxu0 0
    %789 = vmatpush1.bf16.msra.mxu0 0
    %790 = vmatprep.subr.bf16.mxu0 0
    %791 = vmatpush1.bf16.msra.mxu0 0
    %792 = vmatprep.subr.bf16.mxu0 0
    %793 = vmatpush1.bf16.msra.mxu0 0
    %794 = vmatprep.subr.bf16.mxu0 0
    %795 = vmatpush1.bf16.msra.mxu0 0
    %796 = vmatprep.subr.bf16.mxu0 0
    %797 = vmatpush1.bf16.msra.mxu0 0
    %798 = vmatprep.subr.bf16.mxu0 0
    %799 = vmatpush1.bf16.msra.mxu0 0
    %800 = vmatprep.subr.bf16.mxu0 0
    %801 = vmatpush1.bf16.msra.mxu0 0
    %802 = vmatprep.mubr.bf16.mxu0 0
    %803 = vmatmul.mubr.bf16.gmra.mrb[0].mxu0 %v721
    %v804 = vpop.f32.mrb[0].mxu0
    %v805 = vadd.f32 %v78, %v804
    %v806 = vpop.f32.mrb[0].mxu0
    %v807 = vpop.f32.mrb[0].mxu0
    %v808 = vadd.f32 %v79, %v807
    %v809 = vpop.f32.mrb[0].mxu0
    %810 = vdwg.mxu0
    %v811 = vadd.f32 %v805, %v644
    %v812 = vadd.f32 %v808, %v645
    %v813 = vsel %vm137, %v811, 0.0
    %814 = vadd.xlane.f32.xlu0 %v813
    %v815 = vpop.xlane.xlu0 %814
    %v816 = vsel %vm137, %v812, 0.0
    %817 = vadd.xlane.f32.xlu0 %v816
    %v818 = vpop.xlane.xlu0 %817
    %v819 = vmul.f32 %v815, 0.03125
    %v820 = vmul.f32 %v818, 0.03125
    %v821 = vsub.f32 %v811, %v819
    %v822 = vsub.f32 %v812, %v820
    %v823 = vmul.f32 %v821, %v821
    %v824 = vmul.f32 %v822, %v822
    %v825 = vsel %vm137, %v823, 0.0
    %826 = vadd.xlane.f32.xlu0 %v825
    %v827 = vpop.xlane.xlu0 %826
    %v828 = vsel %vm137, %v824, 0.0
    %829 = vadd.xlane.f32.xlu0 %v828
    %v830 = vpop.xlane.xlu0 %829
    %v831 = vmul.f32 %v827, 0.03125
    %v832 = vmul.f32 %v830, 0.03125
    %v833 = vadd.f32 %v831, 1e-12
    %v834 = vadd.f32 %v832, 1e-12
    %v835 = vrsqrt.pop %v833
    %v836 = vrsqrt.pop %v834
    %v837 = vmul.f32 %v821, %v835
    %v838 = vmul.f32 %v822, %v836
    %v839 = vmul.f32 %v837, %v80
    %v840 = vmul.f32 %v838, %v81
    %v841 = vadd.f32 %v839, %v82
    %v842 = vadd.f32 %v840, %v83
    %843 = vst.msk [vmem:[#allocation2] sm:$0xff] %vm137, %v841
    %844 = vst.msk [vmem:[#allocation2 + $0x8] sm:$0xff] %vm137, %v842
    // Predicated region
    $region30: #{tpu_custom_call.1} parent=1 // pred_check
      _
    $region31: #{tpu_custom_call.1} parent=1 // pred_check_branch
      %846 = sbr.rel (0) target = $region33
    $region32: #{tpu_custom_call.1} parent=1 // pred_region
      %s848 = ssub.s32 256, 256
      %849 = vsyncadd [#allocation3], %s848
      %s850 = sshll.u32 [#allocation2], 4
      %s851 = int_to_ptr.vmem [resolvable:$true] %s850
      %856 = dma.vmem_to_hbm [thread:$0]  %s851, 256, %s7, [#allocation3], 128, 128, 8
    $region33: #{tpu_custom_call.1} parent=1 // pred_fallthru
      _
    // Predicated region
    $region34: #{tpu_custom_call.1} parent=1 // pred_check
      _
    $region35: #{tpu_custom_call.1} parent=1 // pred_check_branch
      %858 = sbr.rel (0) target = $region37
    $region36: #{tpu_custom_call.1} parent=1 // pred_region
      %859 = dma.done [#allocation3], 256
    $region37: #{tpu_custom_call.1} parent=1 // pred_fallthru
      _
    %860 = vsyncpa [#allocation3], 1

</llo_original>
